<compile_context>
chip_gen: v7x
topology: tpu7x:2x2x1
jax: 0.10.0
libtpu: 0.0.40
codegen_flags: <defaults>
</compile_context>

<pallas_src>
import functools

import jax
import jax.numpy as jnp
from jax.experimental import pallas as pl
from jax.experimental.pallas import tpu as pltpu

LANE = 128          # TPU lane width; pad all layer out-dims to this.
SUBLANE = 16        # batch-tile granularity (legal for both f32 and bf16 blocks)
MAX_TILE_B = 2048   # max batch tile size for the pipelined grid.


def _cdiv(a, b):
    return (a + b - 1) // b


def _round_up(n, m):
    return ((n + m - 1) // m) * m


def _leaky_relu(x, slope=0.1):
    return jnp.where(x > 0, x, slope * x)


def dqn_kernel(x_ref,
               w1_ref, b1_ref,
               w2_ref, b2_ref,
               w3_ref, b3_ref,
               w4_ref, b4_ref,
               w5_ref, b5_ref,
               o_ref,
               *, compute_dtype):
    """One batch tile through the full 5-layer MLP.  All weights VMEM-resident."""

    def dot(a, w_ref):
        # MXU matmul (bf16 or f32 inputs) with f32 accumulation.
        return jnp.dot(a.astype(compute_dtype), w_ref[...],
                       preferred_element_type=jnp.float32)

    x = x_ref[...]

    h = dot(x, w1_ref) + b1_ref[...]        # f32 bias add / activation
    h = jnp.maximum(h, 0.0)                 # ReLU

    h = dot(h, w2_ref) + b2_ref[...]
    h = _leaky_relu(h, 0.1)                 # LeakyReLU(0.1)

    h = dot(h, w3_ref) + b3_ref[...]
    h = _leaky_relu(h, 0.1)                 # LeakyReLU(0.1)

    h = dot(h, w4_ref) + b4_ref[...]
    h = jnp.maximum(h, 0.0)                 # ReLU

    h = dot(h, w5_ref) + b5_ref[...]

    o_ref[...] = h.astype(o_ref.dtype)      # lane-dense (tile_b, 128) store


def _pad_params(params, weight_dtype):
    """Zero-pad every layer's out-dim (and the next layer's in-dim) to 128 lanes."""
    padded = []
    prev_out_pad = None
    for (w, b) in params:
        fan_in, fan_out = w.shape
        in_pad = fan_in if prev_out_pad is None else prev_out_pad
        out_pad = _round_up(max(fan_out, LANE), LANE)
        wp = jnp.zeros((in_pad, out_pad), weight_dtype)
        wp = wp.at[:fan_in, :fan_out].set(w.astype(weight_dtype))
        bp = jnp.zeros((1, out_pad), jnp.float32)
        bp = bp.at[:, :fan_out].set(b.astype(jnp.float32))
        padded.append((wp, bp))
        prev_out_pad = out_pad
    return padded


def _pick_tiling(batch, max_tile_b):
    """Pick (tile_b, b_pad, num_tiles): big tiles, but >=2 tiles for v7x megacore."""
    max_tile_b = max(SUBLANE, _round_up(max_tile_b, SUBLANE))
    num_tiles = max(1, _cdiv(batch, max_tile_b))
    # v7x has 2 TensorCores per chip; keep >=2 grid steps so both get a tile
    # (no-op cost on 1-TC v5e/v6e, only matters once the batch is non-trivial).
    if batch > 2 * SUBLANE:
        num_tiles = max(num_tiles, 2)
    tile_b = _round_up(_cdiv(batch, num_tiles), SUBLANE)
    b_pad = num_tiles * tile_b
    return tile_b, b_pad, num_tiles


def dqn_forward(x, params, *, tile_b=MAX_TILE_B, compute_dtype=jnp.bfloat16,
                out_dtype=None, return_padded=False):
    """x: (B, nState) float32; params: list of (W_t, b), W_t shaped (in, out).

    compute_dtype=bfloat16 (default) halves HBM traffic and doubles MXU
    throughput on v6e/v7x while keeping f32 accumulation and f32 elementwise;
    pass compute_dtype=jnp.float32 for a bit-exact match with the reference.
    return_padded=True hands back the lane-dense (B_pad, 128) slab (rows >= B
    and columns >= nAction are padding) so a fused consumer can skip the
    wrapper-side slice copy.
    """
    B, n_state = x.shape
    n_action = params[-1][0].shape[1]
    out_dtype = compute_dtype if out_dtype is None else out_dtype

    # NOTE: in production, pre-pad the params once outside the hot path.
    padded = _pad_params(params, compute_dtype)
    out_pad = padded[-1][0].shape[1]        # 128 (lane-dense output slab)

    tile_b, b_pad, num_tiles = _pick_tiling(B, tile_b)
    if b_pad != B:
        x = jnp.pad(x, ((0, b_pad - B), (0, 0)))
    x = x.astype(compute_dtype)

    grid = (num_tiles,)

    flat_args = [x]
    in_specs = [pl.BlockSpec((tile_b, n_state), lambda i: (i, 0))]
    for (w, b) in padded:
        flat_args += [w, b]
        # Weights/biases: whole array, same block every grid step -> stay
        # resident in VMEM across the batch loop (no per-step re-DMA).
        in_specs += [pl.BlockSpec(w.shape, lambda i: (0, 0)),
                     pl.BlockSpec(b.shape, lambda i: (0, 0))]

    kernel = functools.partial(dqn_kernel, compute_dtype=compute_dtype)

    out = pl.pallas_call(
        kernel,
        out_shape=jax.ShapeDtypeStruct((b_pad, out_pad), out_dtype),
        grid=grid,
        in_specs=in_specs,
        out_specs=pl.BlockSpec((tile_b, out_pad), lambda i: (i, 0)),
        compiler_params=pltpu.CompilerParams(
            dimension_semantics=("parallel",)),   # 2-TC batch sharding on v7x
    )(*flat_args)

    if return_padded:
        return out
    return out[:B, :n_action]


def init_params(key, n_state, n_action):
    """PyTorch Linear default init (uniform +-1/sqrt(fan_in)).

    Returns list of (W_transposed, bias_2d): W_t is (in, out), b is (1, out)."""
    dims = [(n_state, 32), (32, 128), (128, 128), (128, 16), (16, n_action)]
    params = []
    for (fan_in, fan_out) in dims:
        key, kw, kb = jax.random.split(key, 3)
        bound = 1.0 / jnp.sqrt(jnp.float32(fan_in))
        w_t = jax.random.uniform(kw, (fan_in, fan_out), jnp.float32,
                                 minval=-bound, maxval=bound)
        b = jax.random.uniform(kb, (1, fan_out), jnp.float32,
                               minval=-bound, maxval=bound)
        params.append((w_t, b))
    return params


def reference_forward(x, params):
    """Pure-JAX reference for correctness checking."""
    h = x @ params[0][0] + params[0][1]
    h = jnp.maximum(h, 0.0)
    h = h @ params[1][0] + params[1][1]
    h = jnp.where(h > 0, h, 0.1 * h)
    h = h @ params[2][0] + params[2][1]
    h = jnp.where(h > 0, h, 0.1 * h)
    h = h @ params[3][0] + params[3][1]
    h = jnp.maximum(h, 0.0)
    h = h @ params[4][0] + params[4][1]
    return h


if __name__ == "__main__":
    key = jax.random.PRNGKey(0)
    B, N_STATE, N_ACTION = 8, 16, 4

    key, kx = jax.random.split(key)
    x = jax.random.normal(kx, (B, N_STATE), jnp.float32)

    params = init_params(key, N_STATE, N_ACTION)
    ref = reference_forward(x, params)

    # 1) f32 path: bit-exact (in tolerance) vs. the pure-JAX reference.
    out_f32 = jax.block_until_ready(
        dqn_forward(x, params, compute_dtype=jnp.float32))
    assert out_f32.shape == (B, N_ACTION)
    assert jnp.allclose(out_f32, ref, atol=1e-5, rtol=1e-5), "f32 mismatch"

    # 2) Production default (bf16 weights/activations, f32 accumulation).
    out_bf16 = jax.block_until_ready(dqn_forward(x, params))
    assert out_bf16.shape == (B, N_ACTION)
    assert jnp.allclose(out_bf16.astype(jnp.float32), ref,
                        atol=5e-2, rtol=5e-2), "bf16 mismatch"

    # 3) Multi-tile / ragged-batch path (B not a tile multiple, >=2 grid steps).
    key, kx2 = jax.random.split(key)
    B_BIG = 2 * MAX_TILE_B + 37
    x_big = jax.random.normal(kx2, (B_BIG, N_STATE), jnp.float32)
    ref_big = reference_forward(x_big, params)

    out_big = jax.block_until_ready(dqn_forward(x_big, params))
    assert out_big.shape == (B_BIG, N_ACTION)
    assert jnp.allclose(out_big.astype(jnp.float32), ref_big,
                        atol=5e-2, rtol=5e-2), "bf16 mismatch (big batch)"

    out_big_f32 = jax.block_until_ready(
        dqn_forward(x_big, params, compute_dtype=jnp.float32))
    assert jnp.allclose(out_big_f32, ref_big, atol=1e-4, rtol=1e-4), \
        "f32 mismatch (big batch)"

    print("KERNEL_OK")
</pallas_src>

<mosaic_0001>
module attributes {stable_mosaic.version = 11 : i64} {
  func.func @dqn_kernel(%arg0: i32, %arg1: memref<16x16xf32, #tpu.memory_space<vmem>>, %arg2: memref<16x128xf32, #tpu.memory_space<vmem>>, %arg3: memref<1x128xf32, #tpu.memory_space<vmem>>, %arg4: memref<128x128xf32, #tpu.memory_space<vmem>>, %arg5: memref<1x128xf32, #tpu.memory_space<vmem>>, %arg6: memref<128x128xf32, #tpu.memory_space<vmem>>, %arg7: memref<1x128xf32, #tpu.memory_space<vmem>>, %arg8: memref<128x128xf32, #tpu.memory_space<vmem>>, %arg9: memref<1x128xf32, #tpu.memory_space<vmem>>, %arg10: memref<128x128xf32, #tpu.memory_space<vmem>>, %arg11: memref<1x128xf32, #tpu.memory_space<vmem>>, %arg12: memref<16x128xf32, #tpu.memory_space<vmem>>) attributes {dimension_semantics = [#tpu.dimension_semantics<parallel>], iteration_bounds = array<i64: 1>, scalar_prefetch = 0 : i64, scratch_operands = 0 : i64, tpu.core_type = #tpu.core_type<tc>, window_params = [{transform_indices = @transform_0, window_bounds = array<i64: 16, 16>}, {pipeline_mode = #tpu.pipeline_mode<synchronous>, transform_indices = @transform_1, window_bounds = array<i64: 16, 128>}, {pipeline_mode = #tpu.pipeline_mode<synchronous>, transform_indices = @transform_2, window_bounds = array<i64: 1, 128>}, {pipeline_mode = #tpu.pipeline_mode<synchronous>, transform_indices = @transform_3, window_bounds = array<i64: 128, 128>}, {pipeline_mode = #tpu.pipeline_mode<synchronous>, transform_indices = @transform_4, window_bounds = array<i64: 1, 128>}, {pipeline_mode = #tpu.pipeline_mode<synchronous>, transform_indices = @transform_5, window_bounds = array<i64: 128, 128>}, {pipeline_mode = #tpu.pipeline_mode<synchronous>, transform_indices = @transform_6, window_bounds = array<i64: 1, 128>}, {pipeline_mode = #tpu.pipeline_mode<synchronous>, transform_indices = @transform_7, window_bounds = array<i64: 128, 128>}, {pipeline_mode = #tpu.pipeline_mode<synchronous>, transform_indices = @transform_8, window_bounds = array<i64: 1, 128>}, {pipeline_mode = #tpu.pipeline_mode<synchronous>, transform_indices = @transform_9, window_bounds = array<i64: 128, 128>}, {pipeline_mode = #tpu.pipeline_mode<synchronous>, transform_indices = @transform_10, window_bounds = array<i64: 1, 128>}, {transform_indices = @transform_11, window_bounds = array<i64: 16, 128>}]} {
    %c0 = arith.constant 0 : index
    %c0_0 = arith.constant 0 : index
    %0 = vector.load %arg1[%c0, %c0_0] : memref<16x16xf32, #tpu.memory_space<vmem>>, vector<16x16xf32>
    %c0_1 = arith.constant 0 : index
    %c0_2 = arith.constant 0 : index
    %1 = vector.load %arg2[%c0_1, %c0_2] : memref<16x128xf32, #tpu.memory_space<vmem>>, vector<16x128xf32>
    %cst = arith.constant dense<0.000000e+00> : vector<16x128xf32>
    %2 = tpu.matmul %0, %1, %cst {dimension_numbers = #tpu.dot_dimension_numbers<[1], [0], [0], [1], [0, 0, 1, 1], [], []>} : vector<16x16xf32>, vector<16x128xf32>, vector<16x128xf32> -> vector<16x128xf32>
    %c0_3 = arith.constant 0 : index
    %c0_4 = arith.constant 0 : index
    %3 = vector.load %arg3[%c0_3, %c0_4] : memref<1x128xf32, #tpu.memory_space<vmem>>, vector<1x128xf32>
    %4 = vector.broadcast %3 : vector<1x128xf32> to vector<16x128xf32>
    %5 = arith.addf %2, %4 : vector<16x128xf32>
    %cst_5 = arith.constant 0.000000e+00 : f32
    %6 = vector.broadcast %cst_5 : f32 to vector<16x128xf32>
    %7 = arith.maximumf %5, %6 : vector<16x128xf32>
    %c0_6 = arith.constant 0 : index
    %c0_7 = arith.constant 0 : index
    %8 = vector.load %arg4[%c0_6, %c0_7] : memref<128x128xf32, #tpu.memory_space<vmem>>, vector<128x128xf32>
    %cst_8 = arith.constant dense<0.000000e+00> : vector<16x128xf32>
    %9 = tpu.matmul %7, %8, %cst_8 {dimension_numbers = #tpu.dot_dimension_numbers<[1], [0], [0], [1], [0, 0, 1, 1], [], []>} : vector<16x128xf32>, vector<128x128xf32>, vector<16x128xf32> -> vector<16x128xf32>
    %c0_9 = arith.constant 0 : index
    %c0_10 = arith.constant 0 : index
    %10 = vector.load %arg5[%c0_9, %c0_10] : memref<1x128xf32, #tpu.memory_space<vmem>>, vector<1x128xf32>
    %11 = vector.broadcast %10 : vector<1x128xf32> to vector<16x128xf32>
    %12 = arith.addf %9, %11 : vector<16x128xf32>
    %cst_11 = arith.constant 0.000000e+00 : f32
    %13 = vector.broadcast %cst_11 : f32 to vector<16x128xf32>
    %14 = arith.cmpf ogt, %12, %13 : vector<16x128xf32>
    %cst_12 = arith.constant 1.000000e-01 : f32
    %15 = vector.broadcast %cst_12 : f32 to vector<16x128xf32>
    %16 = arith.mulf %15, %12 : vector<16x128xf32>
    %17 = arith.select %14, %12, %16 : vector<16x128xi1>, vector<16x128xf32>
    %c0_13 = arith.constant 0 : index
    %c0_14 = arith.constant 0 : index
    %18 = vector.load %arg6[%c0_13, %c0_14] : memref<128x128xf32, #tpu.memory_space<vmem>>, vector<128x128xf32>
    %cst_15 = arith.constant dense<0.000000e+00> : vector<16x128xf32>
    %19 = tpu.matmul %17, %18, %cst_15 {dimension_numbers = #tpu.dot_dimension_numbers<[1], [0], [0], [1], [0, 0, 1, 1], [], []>} : vector<16x128xf32>, vector<128x128xf32>, vector<16x128xf32> -> vector<16x128xf32>
    %c0_16 = arith.constant 0 : index
    %c0_17 = arith.constant 0 : index
    %20 = vector.load %arg7[%c0_16, %c0_17] : memref<1x128xf32, #tpu.memory_space<vmem>>, vector<1x128xf32>
    %21 = vector.broadcast %20 : vector<1x128xf32> to vector<16x128xf32>
    %22 = arith.addf %19, %21 : vector<16x128xf32>
    %cst_18 = arith.constant 0.000000e+00 : f32
    %23 = vector.broadcast %cst_18 : f32 to vector<16x128xf32>
    %24 = arith.cmpf ogt, %22, %23 : vector<16x128xf32>
    %cst_19 = arith.constant 1.000000e-01 : f32
    %25 = vector.broadcast %cst_19 : f32 to vector<16x128xf32>
    %26 = arith.mulf %25, %22 : vector<16x128xf32>
    %27 = arith.select %24, %22, %26 : vector<16x128xi1>, vector<16x128xf32>
    %c0_20 = arith.constant 0 : index
    %c0_21 = arith.constant 0 : index
    %28 = vector.load %arg8[%c0_20, %c0_21] : memref<128x128xf32, #tpu.memory_space<vmem>>, vector<128x128xf32>
    %cst_22 = arith.constant dense<0.000000e+00> : vector<16x128xf32>
    %29 = tpu.matmul %27, %28, %cst_22 {dimension_numbers = #tpu.dot_dimension_numbers<[1], [0], [0], [1], [0, 0, 1, 1], [], []>} : vector<16x128xf32>, vector<128x128xf32>, vector<16x128xf32> -> vector<16x128xf32>
    %c0_23 = arith.constant 0 : index
    %c0_24 = arith.constant 0 : index
    %30 = vector.load %arg9[%c0_23, %c0_24] : memref<1x128xf32, #tpu.memory_space<vmem>>, vector<1x128xf32>
    %31 = vector.broadcast %30 : vector<1x128xf32> to vector<16x128xf32>
    %32 = arith.addf %29, %31 : vector<16x128xf32>
    %cst_25 = arith.constant 0.000000e+00 : f32
    %33 = vector.broadcast %cst_25 : f32 to vector<16x128xf32>
    %34 = arith.maximumf %32, %33 : vector<16x128xf32>
    %c0_26 = arith.constant 0 : index
    %c0_27 = arith.constant 0 : index
    %35 = vector.load %arg10[%c0_26, %c0_27] : memref<128x128xf32, #tpu.memory_space<vmem>>, vector<128x128xf32>
    %cst_28 = arith.constant dense<0.000000e+00> : vector<16x128xf32>
    %36 = tpu.matmul %34, %35, %cst_28 {dimension_numbers = #tpu.dot_dimension_numbers<[1], [0], [0], [1], [0, 0, 1, 1], [], []>} : vector<16x128xf32>, vector<128x128xf32>, vector<16x128xf32> -> vector<16x128xf32>
    %c0_29 = arith.constant 0 : index
    %c0_30 = arith.constant 0 : index
    %37 = vector.load %arg11[%c0_29, %c0_30] : memref<1x128xf32, #tpu.memory_space<vmem>>, vector<1x128xf32>
    %38 = vector.broadcast %37 : vector<1x128xf32> to vector<16x128xf32>
    %39 = arith.addf %36, %38 : vector<16x128xf32>
    %c0_31 = arith.constant 0 : index
    %c0_32 = arith.constant 0 : index
    %40 = vector.load %arg12[%c0_31, %c0_32] : memref<16x128xf32, #tpu.memory_space<vmem>>, vector<16x128xf32>
    tpu.vector_store %arg12[%c0_31, %c0_32], %39 {strides = array<i32>} : memref<16x128xf32, #tpu.memory_space<vmem>>, vector<16x128xf32>,
    return
  }
  func.func @transform_0(%arg0: i32) -> (i32, i32) {
    %c0_i32 = arith.constant 0 : i32
    %c0_i32_0 = arith.constant 0 : i32
    return %arg0, %c0_i32 : i32, i32
  }
  func.func @transform_1(%arg0: i32) -> (i32, i32) {
    %c0_i32 = arith.constant 0 : i32
    %c0_i32_0 = arith.constant 0 : i32
    %c0_i32_1 = arith.constant 0 : i32
    return %c0_i32, %c0_i32_0 : i32, i32
  }
  func.func @transform_2(%arg0: i32) -> (i32, i32) {
    %c0_i32 = arith.constant 0 : i32
    %c0_i32_0 = arith.constant 0 : i32
    %c0_i32_1 = arith.constant 0 : i32
    return %c0_i32, %c0_i32_0 : i32, i32
  }
  func.func @transform_3(%arg0: i32) -> (i32, i32) {
    %c0_i32 = arith.constant 0 : i32
    %c0_i32_0 = arith.constant 0 : i32
    %c0_i32_1 = arith.constant 0 : i32
    return %c0_i32, %c0_i32_0 : i32, i32
  }
  func.func @transform_4(%arg0: i32) -> (i32, i32) {
    %c0_i32 = arith.constant 0 : i32
    %c0_i32_0 = arith.constant 0 : i32
    %c0_i32_1 = arith.constant 0 : i32
    return %c0_i32, %c0_i32_0 : i32, i32
  }
  func.func @transform_5(%arg0: i32) -> (i32, i32) {
    %c0_i32 = arith.constant 0 : i32
    %c0_i32_0 = arith.constant 0 : i32
    %c0_i32_1 = arith.constant 0 : i32
    return %c0_i32, %c0_i32_0 : i32, i32
  }
  func.func @transform_6(%arg0: i32) -> (i32, i32) {
    %c0_i32 = arith.constant 0 : i32
    %c0_i32_0 = arith.constant 0 : i32
    %c0_i32_1 = arith.constant 0 : i32
    return %c0_i32, %c0_i32_0 : i32, i32
  }
  func.func @transform_7(%arg0: i32) -> (i32, i32) {
    %c0_i32 = arith.constant 0 : i32
    %c0_i32_0 = arith.constant 0 : i32
    %c0_i32_1 = arith.constant 0 : i32
    return %c0_i32, %c0_i32_0 : i32, i32
  }
  func.func @transform_8(%arg0: i32) -> (i32, i32) {
    %c0_i32 = arith.constant 0 : i32
    %c0_i32_0 = arith.constant 0 : i32
    %c0_i32_1 = arith.constant 0 : i32
    return %c0_i32, %c0_i32_0 : i32, i32
  }
  func.func @transform_9(%arg0: i32) -> (i32, i32) {
    %c0_i32 = arith.constant 0 : i32
    %c0_i32_0 = arith.constant 0 : i32
    %c0_i32_1 = arith.constant 0 : i32
    return %c0_i32, %c0_i32_0 : i32, i32
  }
  func.func @transform_10(%arg0: i32) -> (i32, i32) {
    %c0_i32 = arith.constant 0 : i32
    %c0_i32_0 = arith.constant 0 : i32
    %c0_i32_1 = arith.constant 0 : i32
    return %c0_i32, %c0_i32_0 : i32, i32
  }
  func.func @transform_11(%arg0: i32) -> (i32, i32) {
    %c0_i32 = arith.constant 0 : i32
    %c0_i32_0 = arith.constant 0 : i32
    return %arg0, %c0_i32 : i32, i32
  }
}

</mosaic_0001>

<llo_original>
// kernel: tpu_custom_call.1
$region0: #{tpu_custom_call.1}
  #allocation0 [shape = 'u32[]', space=smem, size = 0x4, offset = 0x4, fixed_abs, tag = 'smem constant byte address 0x4 - core index']
  #allocation1 [shape = 'u32[144,128]{1,0:T(1,128)}', space=vmem, size = 0x12000, scoped, tag = 'internal scratch']
  %s0 = inlined_call_operand.hbm [shape: f32[16,16], index: 0, kind: input, shape index: {}]
  %s1 = inlined_call_operand.hbm [shape: f32[16,128], index: 1, kind: input, shape index: {}]
  %s2 = inlined_call_operand.vmem [shape: f32[1,128], index: 2, kind: input, shape index: {}]
  %s3 = inlined_call_operand.hbm [shape: f32[128,128], index: 3, kind: input, shape index: {}]
  %s4 = inlined_call_operand.vmem [shape: f32[1,128], index: 4, kind: input, shape index: {}]
  %s5 = inlined_call_operand.hbm [shape: f32[128,128], index: 5, kind: input, shape index: {}]
  %s6 = inlined_call_operand.vmem [shape: f32[1,128], index: 6, kind: input, shape index: {}]
  %s7 = inlined_call_operand.hbm [shape: f32[128,128], index: 7, kind: input, shape index: {}]
  %s8 = inlined_call_operand.vmem [shape: f32[1,128], index: 8, kind: input, shape index: {}]
  %s9 = inlined_call_operand.hbm [shape: f32[128,128], index: 9, kind: input, shape index: {}]
  %s10 = inlined_call_operand.vmem [shape: f32[1,128], index: 10, kind: input, shape index: {}]
  %s11 = inlined_call_operand.hbm [shape: f32[16,128], index: 11, kind: output, shape index: {}]
  %s12 = sld [smem:[#allocation0]]
  $region78: #{tpu_custom_call.1} parent=0
    _
  %s14 = ssub.s32 1, %s12
  %s15 = scalar_select 0, %s14, %s12
  $region1: #{tpu_custom_call.1} parent=0
    #allocation2 [shape = 'u8[8192]{0}', space=vmem, size = 0x2000, scoped, tag = 'input window, operand 0, single buffered']
    #allocation3 [shape = 's32[1]{0}', space=sflag, size = 0x4, scoped, tag = 'scoped memory for tpu_custom_call.1']
    #allocation4 [shape = 's32[1]{0}', space=sflag, size = 0x4, scoped, tag = 'scoped memory for tpu_custom_call.1']
    #allocation5 [shape = 'u8[8192]{0}', space=vmem, size = 0x2000, scoped, tag = 'input window, operand 1, single buffered']
    #allocation6 [shape = 's32[1]{0}', space=sflag, size = 0x4, scoped, tag = 'scoped memory for tpu_custom_call.1']
    #allocation7 [shape = 'u8[65536]{0}', space=vmem, size = 0x10000, scoped, tag = 'input window, operand 3, single buffered']
    #allocation8 [shape = 'u8[65536]{0}', space=vmem, size = 0x10000, scoped, tag = 'input window, operand 5, single buffered']
    #allocation9 [shape = 's32[1]{0}', space=sflag, size = 0x4, scoped, tag = 'scoped memory for tpu_custom_call.1']
    #allocation10 [shape = 'u8[65536]{0}', space=vmem, size = 0x10000, scoped, tag = 'input window, operand 7, single buffered']
    #allocation11 [shape = 'u8[65536]{0}', space=vmem, size = 0x10000, scoped, tag = 'input window, operand 9, single buffered']
    #allocation12 [shape = 's32[1]{0}', space=sflag, size = 0x4, scoped, tag = 'scoped memory for tpu_custom_call.1']
    #allocation13 [shape = 'u8[8192]{0}', space=vmem, size = 0x2000, scoped, tag = 'output window, operand 0, single buffered']
    %16 = vsyncpa [#allocation3], 0
    %17 = vsyncpa [#allocation6], 0
    %18 = vsyncpa [#allocation9], 0
    %19 = vsyncpa [#allocation12], 0
    %20 = vsyncpa [#allocation4], 0
    // Predicated region
    $region2: #{tpu_custom_call.1} parent=1 // pred_check
      _
    $region3: #{tpu_custom_call.1} parent=1 // pred_check_branch
      %22 = sbr.rel (0) target = $region5
    $region4: #{tpu_custom_call.1} parent=1 // pred_region
      %s24 = ssub.s32 256, 256
      %25 = vsyncadd [#allocation3], %s24
      %s26 = sshll.u32 [#allocation2], 4
      %s27 = int_to_ptr.vmem [resolvable:$true] %s26
      %32 = dma.hbm_to_vmem [thread:$0]  %s0, 256, %s27, [#allocation3], 128, 128, 8
    $region5: #{tpu_custom_call.1} parent=1 // pred_fallthru
      _
    // Predicated region
    $region6: #{tpu_custom_call.1} parent=1 // pred_check
      _
    $region7: #{tpu_custom_call.1} parent=1 // pred_check_branch
      %34 = sbr.rel (0) target = $region9
    $region8: #{tpu_custom_call.1} parent=1 // pred_region
      %s36 = ssub.s32 256, 256
      %37 = vsyncadd [#allocation6], %s36
      %s38 = sshll.u32 [#allocation5], 4
      %s39 = int_to_ptr.vmem [resolvable:$true] %s38
      %44 = dma.hbm_to_vmem [thread:$0]  %s1, 256, %s39, [#allocation6], 128, 128, 8
    $region9: #{tpu_custom_call.1} parent=1 // pred_fallthru
      _
    // Predicated region
    $region10: #{tpu_custom_call.1} parent=1 // pred_check
      _
    $region11: #{tpu_custom_call.1} parent=1 // pred_check_branch
      %46 = sbr.rel (0) target = $region13
    $region12: #{tpu_custom_call.1} parent=1 // pred_region
      _
    $region13: #{tpu_custom_call.1} parent=1 // pred_fallthru
      _
    // Predicated region
    $region14: #{tpu_custom_call.1} parent=1 // pred_check
      _
    $region15: #{tpu_custom_call.1} parent=1 // pred_check_branch
      %48 = sbr.rel (0) target = $region17
    $region16: #{tpu_custom_call.1} parent=1 // pred_region
      %s50 = ssub.s32 2048, 2048
      %51 = vsyncadd [#allocation6], %s50
      %s52 = sshll.u32 [#allocation7], 4
      %s53 = int_to_ptr.vmem [resolvable:$true] %s52
      %58 = dma.hbm_to_vmem [thread:$0]  %s3, 2048, %s53, [#allocation6], 128, 128, 8
    $region17: #{tpu_custom_call.1} parent=1 // pred_fallthru
      _
    // Predicated region
    $region18: #{tpu_custom_call.1} parent=1 // pred_check
      _
    $region19: #{tpu_custom_call.1} parent=1 // pred_check_branch
      %60 = sbr.rel (0) target = $region21
    $region20: #{tpu_custom_call.1} parent=1 // pred_region
      _
    $region21: #{tpu_custom_call.1} parent=1 // pred_fallthru
      _
    // Predicated region
    $region22: #{tpu_custom_call.1} parent=1 // pred_check
      _
    $region23: #{tpu_custom_call.1} parent=1 // pred_check_branch
      %62 = sbr.rel (0) target = $region25
    $region24: #{tpu_custom_call.1} parent=1 // pred_region
      %s64 = ssub.s32 2048, 2048
      %65 = vsyncadd [#allocation9], %s64
      %s66 = sshll.u32 [#allocation8], 4
      %s67 = int_to_ptr.vmem [resolvable:$true] %s66
      %72 = dma.hbm_to_vmem [thread:$0]  %s5, 2048, %s67, [#allocation9], 128, 128, 8
    $region25: #{tpu_custom_call.1} parent=1 // pred_fallthru
      _
    // Predicated region
    $region26: #{tpu_custom_call.1} parent=1 // pred_check
      _
    $region27: #{tpu_custom_call.1} parent=1 // pred_check_branch
      %74 = sbr.rel (0) target = $region29
    $region28: #{tpu_custom_call.1} parent=1 // pred_region
      _
    $region29: #{tpu_custom_call.1} parent=1 // pred_fallthru
      _
    // Predicated region
    $region30: #{tpu_custom_call.1} parent=1 // pred_check
      _
    $region31: #{tpu_custom_call.1} parent=1 // pred_check_branch
      %76 = sbr.rel (0) target = $region33
    $region32: #{tpu_custom_call.1} parent=1 // pred_region
      %s78 = ssub.s32 2048, 2048
      %79 = vsyncadd [#allocation9], %s78
      %s80 = sshll.u32 [#allocation10], 4
      %s81 = int_to_ptr.vmem [resolvable:$true] %s80
      %86 = dma.hbm_to_vmem [thread:$0]  %s7, 2048, %s81, [#allocation9], 128, 128, 8
    $region33: #{tpu_custom_call.1} parent=1 // pred_fallthru
      _
    // Predicated region
    $region34: #{tpu_custom_call.1} parent=1 // pred_check
      _
    $region35: #{tpu_custom_call.1} parent=1 // pred_check_branch
      %88 = sbr.rel (0) target = $region37
    $region36: #{tpu_custom_call.1} parent=1 // pred_region
      _
    $region37: #{tpu_custom_call.1} parent=1 // pred_fallthru
      _
    // Predicated region
    $region38: #{tpu_custom_call.1} parent=1 // pred_check
      _
    $region39: #{tpu_custom_call.1} parent=1 // pred_check_branch
      %90 = sbr.rel (0) target = $region41
    $region40: #{tpu_custom_call.1} parent=1 // pred_region
      %s92 = ssub.s32 2048, 2048
      %93 = vsyncadd [#allocation12], %s92
      %s94 = sshll.u32 [#allocation11], 4
      %s95 = int_to_ptr.vmem [resolvable:$true] %s94
      %100 = dma.hbm_to_vmem [thread:$0]  %s9, 2048, %s95, [#allocation12], 128, 128, 8
    $region41: #{tpu_custom_call.1} parent=1 // pred_fallthru
      _
    // Predicated region
    $region42: #{tpu_custom_call.1} parent=1 // pred_check
      _
    $region43: #{tpu_custom_call.1} parent=1 // pred_check_branch
      %102 = sbr.rel (0) target = $region45
    $region44: #{tpu_custom_call.1} parent=1 // pred_region
      _
    $region45: #{tpu_custom_call.1} parent=1 // pred_fallthru
      _
    // Predicated region
    $region46: #{tpu_custom_call.1} parent=1 // pred_check
      _
    $region47: #{tpu_custom_call.1} parent=1 // pred_check_branch
      %104 = sbr.rel (0) target = $region49
    $region48: #{tpu_custom_call.1} parent=1 // pred_region
      %105 = dma.done [#allocation3], 256
    $region49: #{tpu_custom_call.1} parent=1 // pred_fallthru
      _
    // Predicated region
    $region50: #{tpu_custom_call.1} parent=1 // pred_check
      _
    $region51: #{tpu_custom_call.1} parent=1 // pred_check_branch
      %107 = sbr.rel (0) target = $region53
    $region52: #{tpu_custom_call.1} parent=1 // pred_region
      %108 = dma.done [#allocation6], 256
    $region53: #{tpu_custom_call.1} parent=1 // pred_fallthru
      _
    // Predicated region
    $region54: #{tpu_custom_call.1} parent=1 // pred_check
      _
    $region55: #{tpu_custom_call.1} parent=1 // pred_check_branch
      %110 = sbr.rel (0) target = $region57
    $region56: #{tpu_custom_call.1} parent=1 // pred_region
      %111 = dma.done [#allocation6], 2048
    $region57: #{tpu_custom_call.1} parent=1 // pred_fallthru
      _
    // Predicated region
    $region58: #{tpu_custom_call.1} parent=1 // pred_check
      _
    $region59: #{tpu_custom_call.1} parent=1 // pred_check_branch
      %113 = sbr.rel (0) target = $region61
    $region60: #{tpu_custom_call.1} parent=1 // pred_region
      %114 = dma.done [#allocation9], 2048
    $region61: #{tpu_custom_call.1} parent=1 // pred_fallthru
      _
    // Predicated region
    $region62: #{tpu_custom_call.1} parent=1 // pred_check
      _
    $region63: #{tpu_custom_call.1} parent=1 // pred_check_branch
      %116 = sbr.rel (0) target = $region65
    $region64: #{tpu_custom_call.1} parent=1 // pred_region
      %117 = dma.done [#allocation9], 2048
    $region65: #{tpu_custom_call.1} parent=1 // pred_fallthru
      _
    // Predicated region
    $region66: #{tpu_custom_call.1} parent=1 // pred_check
      _
    $region67: #{tpu_custom_call.1} parent=1 // pred_check_branch
      %119 = sbr.rel (0) target = $region69
    $region68: #{tpu_custom_call.1} parent=1 // pred_region
      %120 = dma.done [#allocation12], 2048
    $region69: #{tpu_custom_call.1} parent=1 // pred_fallthru
      _
    %v121 = vld [vmem:[#allocation2] sm:$0xff]
    %v122 = vld [vmem:[#allocation2 + $0x8] sm:$0xff]
    %v123 = vld [vmem:[#allocation5] sm:$0xff]
    %v124 = vld [vmem:[#allocation5 + $0x8] sm:$0xff]
    %v125 = vld [vmem:[%s2] sm:$0x1]
    %v127 = vlaneseq
    %v128 = vshrl.u32 %v127, 7
    %v129 = vsub.s32 0, %v128
    %v130 = vrot.slane %v125, %v129
    %vm132 = vcmask 130048
    %v134 = vsel %vm132, %v121, 0
    %v137 = vsel %vm132, %v122, 0
    %139 = vmatprep.subr.mxu0 0.0
    %140 = vmatpush1.msra.mxu0 %v123
    %141 = vmatprep.subr.mxu0 0.0
    %142 = vmatpush1.msra.mxu0 %v124
    %143 = vmatprep.subr.mxu0 0.0
    %144 = vmatpush1.msra.mxu0 0.0
    %145 = vmatprep.subr.mxu0 0.0
    %146 = vmatpush1.msra.mxu0 0.0
    %147 = vmatprep.subr.mxu0 0.0
    %148 = vmatpush1.msra.mxu0 0.0
    %149 = vmatprep.subr.mxu0 0.0
    %150 = vmatpush1.msra.mxu0 0.0
    %151 = vmatprep.subr.mxu0 0.0
    %152 = vmatpush1.msra.mxu0 0.0
    %153 = vmatprep.subr.mxu0 0.0
    %154 = vmatpush1.msra.mxu0 0.0
    %155 = vmatprep.subr.mxu0 0.0
    %156 = vmatpush1.msra.mxu0 0.0
    %157 = vmatprep.subr.mxu0 0.0
    %158 = vmatpush1.msra.mxu0 0.0
    %159 = vmatprep.subr.mxu0 0.0
    %160 = vmatpush1.msra.mxu0 0.0
    %161 = vmatprep.subr.mxu0 0.0
    %162 = vmatpush1.msra.mxu0 0.0
    %163 = vmatprep.subr.mxu0 0.0
    %164 = vmatpush1.msra.mxu0 0.0
    %165 = vmatprep.subr.mxu0 0.0
    %166 = vmatpush1.msra.mxu0 0.0
    %167 = vmatprep.subr.mxu0 0.0
    %168 = vmatpush1.msra.mxu0 0.0
    %169 = vmatprep.subr.mxu0 0.0
    %170 = vmatpush1.msra.mxu0 0.0
    %171 = vmatprep.subr.mxu0 0.0
    %172 = vmatpush1.msra.mxu0 0.0
    %173 = vmatprep.subr.mxu0 0.0
    %174 = vmatpush1.msra.mxu0 0.0
    %175 = vmatprep.subr.mxu0 0.0
    %176 = vmatpush1.msra.mxu0 0.0
    %177 = vmatprep.subr.mxu0 0.0
    %178 = vmatpush1.msra.mxu0 0.0
    %179 = vmatprep.subr.mxu0 0.0
    %180 = vmatpush1.msra.mxu0 0.0
    %181 = vmatprep.subr.mxu0 0.0
    %182 = vmatpush1.msra.mxu0 0.0
    %183 = vmatprep.subr.mxu0 0.0
    %184 = vmatpush1.msra.mxu0 0.0
    %185 = vmatprep.subr.mxu0 0.0
    %186 = vmatpush1.msra.mxu0 0.0
    %187 = vmatprep.subr.mxu0 0.0
    %188 = vmatpush1.msra.mxu0 0.0
    %189 = vmatprep.subr.mxu0 0.0
    %190 = vmatpush1.msra.mxu0 0.0
    %191 = vmatprep.subr.mxu0 0.0
    %192 = vmatpush1.msra.mxu0 0.0
    %193 = vmatprep.subr.mxu0 0.0
    %194 = vmatpush1.msra.mxu0 0.0
    %195 = vmatprep.subr.mxu0 0.0
    %196 = vmatpush1.msra.mxu0 0.0
    %197 = vmatprep.subr.mxu0 0.0
    %198 = vmatpush1.msra.mxu0 0.0
    %199 = vmatprep.subr.mxu0 0.0
    %200 = vmatpush1.msra.mxu0 0.0
    %201 = vmatprep.subr.mxu0 0.0
    %202 = vmatpush1.msra.mxu0 0.0
    %203 = vmatprep.mubr.f32.mxu0 0.0
    %204 = vmatmul.mubr.f32.gmra.mrb[0].mxu0 %v134
    %v205 = vpop.f32.mrb[0].mxu0
    %v206 = vadd.f32 %v130, %v205
    %v207 = vpop.f32.mrb[0].mxu0
    %208 = vmatprep.mubr.f32.mxu0 0.0
    %209 = vmatmul.mubr.f32.gmra.mrb[0].mxu0 %v137
    %v210 = vpop.f32.mrb[0].mxu0
    %v211 = vadd.f32 %v130, %v210
    %v212 = vpop.f32.mrb[0].mxu0
    %213 = vdwg.mxu0
    %v214 = vmax.f32 %v206, 0.0
    %v215 = vmax.f32 %v211, 0.0
    %v216 = vld [vmem:[#allocation7] sm:$0xff]
    %v217 = vld [vmem:[#allocation7 + $0x8] sm:$0xff]
    %v218 = vld [vmem:[#allocation7 + $0x10] sm:$0xff]
    %v219 = vld [vmem:[#allocation7 + $0x18] sm:$0xff]
    %v220 = vld [vmem:[#allocation7 + $0x20] sm:$0xff]
    %v221 = vld [vmem:[#allocation7 + $0x28] sm:$0xff]
    %v222 = vld [vmem:[#allocation7 + $0x30] sm:$0xff]
    %v223 = vld [vmem:[#allocation7 + $0x38] sm:$0xff]
    %v224 = vld [vmem:[#allocation7 + $0x40] sm:$0xff]
    %v225 = vld [vmem:[#allocation7 + $0x48] sm:$0xff]
    %v226 = vld [vmem:[#allocation7 + $0x50] sm:$0xff]
    %v227 = vld [vmem:[#allocation7 + $0x58] sm:$0xff]
    %v228 = vld [vmem:[#allocation7 + $0x60] sm:$0xff]
    %v229 = vld [vmem:[#allocation7 + $0x68] sm:$0xff]
    %v230 = vld [vmem:[#allocation7 + $0x70] sm:$0xff]
    %v231 = vld [vmem:[#allocation7 + $0x78] sm:$0xff]
    %v232 = vld [vmem:[%s4] sm:$0x1]
    %v234 = vlaneseq
    %v235 = vshrl.u32 %v234, 7
    %v236 = vsub.s32 0, %v235
    %v237 = vrot.slane %v232, %v236
    %239 = vmatprep.subr.mxu0 0.0
    %240 = vmatpush1.msra.mxu0 %v216
    %241 = vmatprep.subr.mxu0 0.0
    %242 = vmatpush1.msra.mxu0 %v217
    %243 = vmatprep.subr.mxu0 0.0
    %244 = vmatpush1.msra.mxu0 %v218
    %245 = vmatprep.subr.mxu0 0.0
    %246 = vmatpush1.msra.mxu0 %v219
    %247 = vmatprep.subr.mxu0 0.0
    %248 = vmatpush1.msra.mxu0 %v220
    %249 = vmatprep.subr.mxu0 0.0
    %250 = vmatpush1.msra.mxu0 %v221
    %251 = vmatprep.subr.mxu0 0.0
    %252 = vmatpush1.msra.mxu0 %v222
    %253 = vmatprep.subr.mxu0 0.0
    %254 = vmatpush1.msra.mxu0 %v223
    %255 = vmatprep.subr.mxu0 0.0
    %256 = vmatpush1.msra.mxu0 %v224
    %257 = vmatprep.subr.mxu0 0.0
    %258 = vmatpush1.msra.mxu0 %v225
    %259 = vmatprep.subr.mxu0 0.0
    %260 = vmatpush1.msra.mxu0 %v226
    %261 = vmatprep.subr.mxu0 0.0
    %262 = vmatpush1.msra.mxu0 %v227
    %263 = vmatprep.subr.mxu0 0.0
    %264 = vmatpush1.msra.mxu0 %v228
    %265 = vmatprep.subr.mxu0 0.0
    %266 = vmatpush1.msra.mxu0 %v229
    %267 = vmatprep.subr.mxu0 0.0
    %268 = vmatpush1.msra.mxu0 %v230
    %269 = vmatprep.subr.mxu0 0.0
    %270 = vmatpush1.msra.mxu0 %v231
    %271 = vmatprep.subr.mxu0 0.0
    %272 = vmatpush1.msra.mxu0 0.0
    %273 = vmatprep.subr.mxu0 0.0
    %274 = vmatpush1.msra.mxu0 0.0
    %275 = vmatprep.subr.mxu0 0.0
    %276 = vmatpush1.msra.mxu0 0.0
    %277 = vmatprep.subr.mxu0 0.0
    %278 = vmatpush1.msra.mxu0 0.0
    %279 = vmatprep.subr.mxu0 0.0
    %280 = vmatpush1.msra.mxu0 0.0
    %281 = vmatprep.subr.mxu0 0.0
    %282 = vmatpush1.msra.mxu0 0.0
    %283 = vmatprep.subr.mxu0 0.0
    %284 = vmatpush1.msra.mxu0 0.0
    %285 = vmatprep.subr.mxu0 0.0
    %286 = vmatpush1.msra.mxu0 0.0
    %287 = vmatprep.subr.mxu0 0.0
    %288 = vmatpush1.msra.mxu0 0.0
    %289 = vmatprep.subr.mxu0 0.0
    %290 = vmatpush1.msra.mxu0 0.0
    %291 = vmatprep.subr.mxu0 0.0
    %292 = vmatpush1.msra.mxu0 0.0
    %293 = vmatprep.subr.mxu0 0.0
    %294 = vmatpush1.msra.mxu0 0.0
    %295 = vmatprep.subr.mxu0 0.0
    %296 = vmatpush1.msra.mxu0 0.0
    %297 = vmatprep.subr.mxu0 0.0
    %298 = vmatpush1.msra.mxu0 0.0
    %299 = vmatprep.subr.mxu0 0.0
    %300 = vmatpush1.msra.mxu0 0.0
    %301 = vmatprep.subr.mxu0 0.0
    %302 = vmatpush1.msra.mxu0 0.0
    %303 = vmatprep.mubr.f32.mxu0 0.0
    %304 = vmatmul.mubr.f32.gmra.mrb[0].mxu0 %v214
    %v305 = vpop.f32.mrb[0].mxu0
    %v306 = vadd.f32 %v237, %v305
    %v307 = vpop.f32.mrb[0].mxu0
    %308 = vmatprep.mubr.f32.mxu0 0.0
    %309 = vmatmul.mubr.f32.gmra.mrb[0].mxu0 %v215
    %v310 = vpop.f32.mrb[0].mxu0
    %v311 = vadd.f32 %v237, %v310
    %v312 = vpop.f32.mrb[0].mxu0
    %313 = vdwg.mxu0
    %vm314 = vcmp.gt.f32.partialorder %v306, 0.0
    %vm315 = vcmp.gt.f32.partialorder %v311, 0.0
    %v316 = vmul.f32 %v306, 0.1
    %v317 = vmul.f32 %v311, 0.1
    %v318 = vsel %vm314, %v306, %v316
    %v319 = vsel %vm315, %v311, %v317
    %v320 = vld [vmem:[#allocation8] sm:$0xff]
    %v321 = vld [vmem:[#allocation8 + $0x8] sm:$0xff]
    %v322 = vld [vmem:[#allocation8 + $0x10] sm:$0xff]
    %v323 = vld [vmem:[#allocation8 + $0x18] sm:$0xff]
    %v324 = vld [vmem:[#allocation8 + $0x20] sm:$0xff]
    %v325 = vld [vmem:[#allocation8 + $0x28] sm:$0xff]
    %v326 = vld [vmem:[#allocation8 + $0x30] sm:$0xff]
    %v327 = vld [vmem:[#allocation8 + $0x38] sm:$0xff]
    %v328 = vld [vmem:[#allocation8 + $0x40] sm:$0xff]
    %v329 = vld [vmem:[#allocation8 + $0x48] sm:$0xff]
    %v330 = vld [vmem:[#allocation8 + $0x50] sm:$0xff]
    %v331 = vld [vmem:[#allocation8 + $0x58] sm:$0xff]
    %v332 = vld [vmem:[#allocation8 + $0x60] sm:$0xff]
    %v333 = vld [vmem:[#allocation8 + $0x68] sm:$0xff]
    %v334 = vld [vmem:[#allocation8 + $0x70] sm:$0xff]
    %v335 = vld [vmem:[#allocation8 + $0x78] sm:$0xff]
    %v336 = vld [vmem:[%s6] sm:$0x1]
    %v338 = vlaneseq
    %v339 = vshrl.u32 %v338, 7
    %v340 = vsub.s32 0, %v339
    %v341 = vrot.slane %v336, %v340
    %343 = vmatprep.subr.mxu0 0.0
    %344 = vmatpush1.msra.mxu0 %v320
    %345 = vmatprep.subr.mxu0 0.0
    %346 = vmatpush1.msra.mxu0 %v321
    %347 = vmatprep.subr.mxu0 0.0
    %348 = vmatpush1.msra.mxu0 %v322
    %349 = vmatprep.subr.mxu0 0.0
    %350 = vmatpush1.msra.mxu0 %v323
    %351 = vmatprep.subr.mxu0 0.0
    %352 = vmatpush1.msra.mxu0 %v324
    %353 = vmatprep.subr.mxu0 0.0
    %354 = vmatpush1.msra.mxu0 %v325
    %355 = vmatprep.subr.mxu0 0.0
    %356 = vmatpush1.msra.mxu0 %v326
    %357 = vmatprep.subr.mxu0 0.0
    %358 = vmatpush1.msra.mxu0 %v327
    %359 = vmatprep.subr.mxu0 0.0
    %360 = vmatpush1.msra.mxu0 %v328
    %361 = vmatprep.subr.mxu0 0.0
    %362 = vmatpush1.msra.mxu0 %v329
    %363 = vmatprep.subr.mxu0 0.0
    %364 = vmatpush1.msra.mxu0 %v330
    %365 = vmatprep.subr.mxu0 0.0
    %366 = vmatpush1.msra.mxu0 %v331
    %367 = vmatprep.subr.mxu0 0.0
    %368 = vmatpush1.msra.mxu0 %v332
    %369 = vmatprep.subr.mxu0 0.0
    %370 = vmatpush1.msra.mxu0 %v333
    %371 = vmatprep.subr.mxu0 0.0
    %372 = vmatpush1.msra.mxu0 %v334
    %373 = vmatprep.subr.mxu0 0.0
    %374 = vmatpush1.msra.mxu0 %v335
    %375 = vmatprep.subr.mxu0 0.0
    %376 = vmatpush1.msra.mxu0 0.0
    %377 = vmatprep.subr.mxu0 0.0
    %378 = vmatpush1.msra.mxu0 0.0
    %379 = vmatprep.subr.mxu0 0.0
    %380 = vmatpush1.msra.mxu0 0.0
    %381 = vmatprep.subr.mxu0 0.0
    %382 = vmatpush1.msra.mxu0 0.0
    %383 = vmatprep.subr.mxu0 0.0
    %384 = vmatpush1.msra.mxu0 0.0
    %385 = vmatprep.subr.mxu0 0.0
    %386 = vmatpush1.msra.mxu0 0.0
    %387 = vmatprep.subr.mxu0 0.0
    %388 = vmatpush1.msra.mxu0 0.0
    %389 = vmatprep.subr.mxu0 0.0
    %390 = vmatpush1.msra.mxu0 0.0
    %391 = vmatprep.subr.mxu0 0.0
    %392 = vmatpush1.msra.mxu0 0.0
    %393 = vmatprep.subr.mxu0 0.0
    %394 = vmatpush1.msra.mxu0 0.0
    %395 = vmatprep.subr.mxu0 0.0
    %396 = vmatpush1.msra.mxu0 0.0
    %397 = vmatprep.subr.mxu0 0.0
    %398 = vmatpush1.msra.mxu0 0.0
    %399 = vmatprep.subr.mxu0 0.0
    %400 = vmatpush1.msra.mxu0 0.0
    %401 = vmatprep.subr.mxu0 0.0
    %402 = vmatpush1.msra.mxu0 0.0
    %403 = vmatprep.subr.mxu0 0.0
    %404 = vmatpush1.msra.mxu0 0.0
    %405 = vmatprep.subr.mxu0 0.0
    %406 = vmatpush1.msra.mxu0 0.0
    %407 = vmatprep.mubr.f32.mxu0 0.0
    %408 = vmatmul.mubr.f32.gmra.mrb[0].mxu0 %v318
    %v409 = vpop.f32.mrb[0].mxu0
    %v410 = vadd.f32 %v341, %v409
    %v411 = vpop.f32.mrb[0].mxu0
    %412 = vmatprep.mubr.f32.mxu0 0.0
    %413 = vmatmul.mubr.f32.gmra.mrb[0].mxu0 %v319
    %v414 = vpop.f32.mrb[0].mxu0
    %v415 = vadd.f32 %v341, %v414
    %v416 = vpop.f32.mrb[0].mxu0
    %417 = vdwg.mxu0
    %vm418 = vcmp.gt.f32.partialorder %v410, 0.0
    %vm419 = vcmp.gt.f32.partialorder %v415, 0.0
    %v420 = vmul.f32 %v410, 0.1
    %v421 = vmul.f32 %v415, 0.1
    %v422 = vsel %vm418, %v410, %v420
    %v423 = vsel %vm419, %v415, %v421
    %v424 = vld [vmem:[#allocation10] sm:$0xff]
    %v425 = vld [vmem:[#allocation10 + $0x8] sm:$0xff]
    %v426 = vld [vmem:[#allocation10 + $0x10] sm:$0xff]
    %v427 = vld [vmem:[#allocation10 + $0x18] sm:$0xff]
    %v428 = vld [vmem:[#allocation10 + $0x20] sm:$0xff]
    %v429 = vld [vmem:[#allocation10 + $0x28] sm:$0xff]
    %v430 = vld [vmem:[#allocation10 + $0x30] sm:$0xff]
    %v431 = vld [vmem:[#allocation10 + $0x38] sm:$0xff]
    %v432 = vld [vmem:[#allocation10 + $0x40] sm:$0xff]
    %v433 = vld [vmem:[#allocation10 + $0x48] sm:$0xff]
    %v434 = vld [vmem:[#allocation10 + $0x50] sm:$0xff]
    %v435 = vld [vmem:[#allocation10 + $0x58] sm:$0xff]
    %v436 = vld [vmem:[#allocation10 + $0x60] sm:$0xff]
    %v437 = vld [vmem:[#allocation10 + $0x68] sm:$0xff]
    %v438 = vld [vmem:[#allocation10 + $0x70] sm:$0xff]
    %v439 = vld [vmem:[#allocation10 + $0x78] sm:$0xff]
    %v440 = vld [vmem:[%s8] sm:$0x1]
    %v442 = vlaneseq
    %v443 = vshrl.u32 %v442, 7
    %v444 = vsub.s32 0, %v443
    %v445 = vrot.slane %v440, %v444
    %447 = vmatprep.subr.mxu0 0.0
    %448 = vmatpush1.msra.mxu0 %v424
    %449 = vmatprep.subr.mxu0 0.0
    %450 = vmatpush1.msra.mxu0 %v425
    %451 = vmatprep.subr.mxu0 0.0
    %452 = vmatpush1.msra.mxu0 %v426
    %453 = vmatprep.subr.mxu0 0.0
    %454 = vmatpush1.msra.mxu0 %v427
    %455 = vmatprep.subr.mxu0 0.0
    %456 = vmatpush1.msra.mxu0 %v428
    %457 = vmatprep.subr.mxu0 0.0
    %458 = vmatpush1.msra.mxu0 %v429
    %459 = vmatprep.subr.mxu0 0.0
    %460 = vmatpush1.msra.mxu0 %v430
    %461 = vmatprep.subr.mxu0 0.0
    %462 = vmatpush1.msra.mxu0 %v431
    %463 = vmatprep.subr.mxu0 0.0
    %464 = vmatpush1.msra.mxu0 %v432
    %465 = vmatprep.subr.mxu0 0.0
    %466 = vmatpush1.msra.mxu0 %v433
    %467 = vmatprep.subr.mxu0 0.0
    %468 = vmatpush1.msra.mxu0 %v434
    %469 = vmatprep.subr.mxu0 0.0
    %470 = vmatpush1.msra.mxu0 %v435
    %471 = vmatprep.subr.mxu0 0.0
    %472 = vmatpush1.msra.mxu0 %v436
    %473 = vmatprep.subr.mxu0 0.0
    %474 = vmatpush1.msra.mxu0 %v437
    %475 = vmatprep.subr.mxu0 0.0
    %476 = vmatpush1.msra.mxu0 %v438
    %477 = vmatprep.subr.mxu0 0.0
    %478 = vmatpush1.msra.mxu0 %v439
    %479 = vmatprep.subr.mxu0 0.0
    %480 = vmatpush1.msra.mxu0 0.0
    %481 = vmatprep.subr.mxu0 0.0
    %482 = vmatpush1.msra.mxu0 0.0
    %483 = vmatprep.subr.mxu0 0.0
    %484 = vmatpush1.msra.mxu0 0.0
    %485 = vmatprep.subr.mxu0 0.0
    %486 = vmatpush1.msra.mxu0 0.0
    %487 = vmatprep.subr.mxu0 0.0
    %488 = vmatpush1.msra.mxu0 0.0
    %489 = vmatprep.subr.mxu0 0.0
    %490 = vmatpush1.msra.mxu0 0.0
    %491 = vmatprep.subr.mxu0 0.0
    %492 = vmatpush1.msra.mxu0 0.0
    %493 = vmatprep.subr.mxu0 0.0
    %494 = vmatpush1.msra.mxu0 0.0
    %495 = vmatprep.subr.mxu0 0.0
    %496 = vmatpush1.msra.mxu0 0.0
    %497 = vmatprep.subr.mxu0 0.0
    %498 = vmatpush1.msra.mxu0 0.0
    %499 = vmatprep.subr.mxu0 0.0
    %500 = vmatpush1.msra.mxu0 0.0
    %501 = vmatprep.subr.mxu0 0.0
    %502 = vmatpush1.msra.mxu0 0.0
    %503 = vmatprep.subr.mxu0 0.0
    %504 = vmatpush1.msra.mxu0 0.0
    %505 = vmatprep.subr.mxu0 0.0
    %506 = vmatpush1.msra.mxu0 0.0
    %507 = vmatprep.subr.mxu0 0.0
    %508 = vmatpush1.msra.mxu0 0.0
    %509 = vmatprep.subr.mxu0 0.0
    %510 = vmatpush1.msra.mxu0 0.0
    %511 = vmatprep.mubr.f32.mxu0 0.0
    %512 = vmatmul.mubr.f32.gmra.mrb[0].mxu0 %v422
    %v513 = vpop.f32.mrb[0].mxu0
    %v514 = vadd.f32 %v445, %v513
    %v515 = vpop.f32.mrb[0].mxu0
    %516 = vmatprep.mubr.f32.mxu0 0.0
    %517 = vmatmul.mubr.f32.gmra.mrb[0].mxu0 %v423
    %v518 = vpop.f32.mrb[0].mxu0
    %v519 = vadd.f32 %v445, %v518
    %v520 = vpop.f32.mrb[0].mxu0
    %521 = vdwg.mxu0
    %v522 = vmax.f32 %v514, 0.0
    %v523 = vmax.f32 %v519, 0.0
    %v524 = vld [vmem:[#allocation11] sm:$0xff]
    %v525 = vld [vmem:[#allocation11 + $0x8] sm:$0xff]
    %v526 = vld [vmem:[#allocation11 + $0x10] sm:$0xff]
    %v527 = vld [vmem:[#allocation11 + $0x18] sm:$0xff]
    %v528 = vld [vmem:[#allocation11 + $0x20] sm:$0xff]
    %v529 = vld [vmem:[#allocation11 + $0x28] sm:$0xff]
    %v530 = vld [vmem:[#allocation11 + $0x30] sm:$0xff]
    %v531 = vld [vmem:[#allocation11 + $0x38] sm:$0xff]
    %v532 = vld [vmem:[#allocation11 + $0x40] sm:$0xff]
    %v533 = vld [vmem:[#allocation11 + $0x48] sm:$0xff]
    %v534 = vld [vmem:[#allocation11 + $0x50] sm:$0xff]
    %v535 = vld [vmem:[#allocation11 + $0x58] sm:$0xff]
    %v536 = vld [vmem:[#allocation11 + $0x60] sm:$0xff]
    %v537 = vld [vmem:[#allocation11 + $0x68] sm:$0xff]
    %v538 = vld [vmem:[#allocation11 + $0x70] sm:$0xff]
    %v539 = vld [vmem:[#allocation11 + $0x78] sm:$0xff]
    %v540 = vld [vmem:[%s10] sm:$0x1]
    %v542 = vlaneseq
    %v543 = vshrl.u32 %v542, 7
    %v544 = vsub.s32 0, %v543
    %v545 = vrot.slane %v540, %v544
    %547 = vmatprep.subr.mxu0 0.0
    %548 = vmatpush1.msra.mxu0 %v524
    %549 = vmatprep.subr.mxu0 0.0
    %550 = vmatpush1.msra.mxu0 %v525
    %551 = vmatprep.subr.mxu0 0.0
    %552 = vmatpush1.msra.mxu0 %v526
    %553 = vmatprep.subr.mxu0 0.0
    %554 = vmatpush1.msra.mxu0 %v527
    %555 = vmatprep.subr.mxu0 0.0
    %556 = vmatpush1.msra.mxu0 %v528
    %557 = vmatprep.subr.mxu0 0.0
    %558 = vmatpush1.msra.mxu0 %v529
    %559 = vmatprep.subr.mxu0 0.0
    %560 = vmatpush1.msra.mxu0 %v530
    %561 = vmatprep.subr.mxu0 0.0
    %562 = vmatpush1.msra.mxu0 %v531
    %563 = vmatprep.subr.mxu0 0.0
    %564 = vmatpush1.msra.mxu0 %v532
    %565 = vmatprep.subr.mxu0 0.0
    %566 = vmatpush1.msra.mxu0 %v533
    %567 = vmatprep.subr.mxu0 0.0
    %568 = vmatpush1.msra.mxu0 %v534
    %569 = vmatprep.subr.mxu0 0.0
    %570 = vmatpush1.msra.mxu0 %v535
    %571 = vmatprep.subr.mxu0 0.0
    %572 = vmatpush1.msra.mxu0 %v536
    %573 = vmatprep.subr.mxu0 0.0
    %574 = vmatpush1.msra.mxu0 %v537
    %575 = vmatprep.subr.mxu0 0.0
    %576 = vmatpush1.msra.mxu0 %v538
    %577 = vmatprep.subr.mxu0 0.0
    %578 = vmatpush1.msra.mxu0 %v539
    %579 = vmatprep.subr.mxu0 0.0
    %580 = vmatpush1.msra.mxu0 0.0
    %581 = vmatprep.subr.mxu0 0.0
    %582 = vmatpush1.msra.mxu0 0.0
    %583 = vmatprep.subr.mxu0 0.0
    %584 = vmatpush1.msra.mxu0 0.0
    %585 = vmatprep.subr.mxu0 0.0
    %586 = vmatpush1.msra.mxu0 0.0
    %587 = vmatprep.subr.mxu0 0.0
    %588 = vmatpush1.msra.mxu0 0.0
    %589 = vmatprep.subr.mxu0 0.0
    %590 = vmatpush1.msra.mxu0 0.0
    %591 = vmatprep.subr.mxu0 0.0
    %592 = vmatpush1.msra.mxu0 0.0
    %593 = vmatprep.subr.mxu0 0.0
    %594 = vmatpush1.msra.mxu0 0.0
    %595 = vmatprep.subr.mxu0 0.0
    %596 = vmatpush1.msra.mxu0 0.0
    %597 = vmatprep.subr.mxu0 0.0
    %598 = vmatpush1.msra.mxu0 0.0
    %599 = vmatprep.subr.mxu0 0.0
    %600 = vmatpush1.msra.mxu0 0.0
    %601 = vmatprep.subr.mxu0 0.0
    %602 = vmatpush1.msra.mxu0 0.0
    %603 = vmatprep.subr.mxu0 0.0
    %604 = vmatpush1.msra.mxu0 0.0
    %605 = vmatprep.subr.mxu0 0.0
    %606 = vmatpush1.msra.mxu0 0.0
    %607 = vmatprep.subr.mxu0 0.0
    %608 = vmatpush1.msra.mxu0 0.0
    %609 = vmatprep.subr.mxu0 0.0
    %610 = vmatpush1.msra.mxu0 0.0
    %611 = vmatprep.mubr.f32.mxu0 0.0
    %612 = vmatmul.mubr.f32.gmra.mrb[0].mxu0 %v522
    %v613 = vpop.f32.mrb[0].mxu0
    %v614 = vadd.f32 %v545, %v613
    %v615 = vpop.f32.mrb[0].mxu0
    %616 = vmatprep.mubr.f32.mxu0 0.0
    %617 = vmatmul.mubr.f32.gmra.mrb[0].mxu0 %v523
    %v618 = vpop.f32.mrb[0].mxu0
    %v619 = vadd.f32 %v545, %v618
    %v620 = vpop.f32.mrb[0].mxu0
    %621 = vdwg.mxu0
    %622 = vst [vmem:[#allocation13] sm:$0xff] %v614
    %623 = vst [vmem:[#allocation13 + $0x8] sm:$0xff] %v619
    // Predicated region
    $region70: #{tpu_custom_call.1} parent=1 // pred_check
      _
    $region71: #{tpu_custom_call.1} parent=1 // pred_check_branch
      %625 = sbr.rel (0) target = $region73
    $region72: #{tpu_custom_call.1} parent=1 // pred_region
      %s627 = ssub.s32 256, 256
      %628 = vsyncadd [#allocation4], %s627
      %s629 = sshll.u32 [#allocation13], 4
      %s630 = int_to_ptr.vmem [resolvable:$true] %s629
      %635 = dma.vmem_to_hbm [thread:$0]  %s630, 256, %s11, [#allocation4], 128, 128, 8
    $region73: #{tpu_custom_call.1} parent=1 // pred_fallthru
      _
    // Predicated region
    $region74: #{tpu_custom_call.1} parent=1 // pred_check
      _
    $region75: #{tpu_custom_call.1} parent=1 // pred_check_branch
      %637 = sbr.rel (0) target = $region77
    $region76: #{tpu_custom_call.1} parent=1 // pred_region
      %638 = dma.done [#allocation4], 256
    $region77: #{tpu_custom_call.1} parent=1 // pred_fallthru
      _
    %639 = vsyncpa [#allocation3], 1
    %640 = vsyncpa [#allocation6], 1
    %641 = vsyncpa [#allocation9], 1
    %642 = vsyncpa [#allocation12], 1
    %643 = vsyncpa [#allocation4], 1

</llo_original>
